<compile_context>
chip_gen: v7x
topology: tpu7x:2x2x1
jax: 0.10.0
libtpu: 0.0.40
codegen_flags: <defaults>
</compile_context>

<pallas_src>
import functools
import math

import jax
import jax.numpy as jnp
from jax.experimental import pallas as pl
from jax.experimental.pallas import tpu as pltpu


def _round_up(x, m):
    return ((x + m - 1) // m) * m


def _cdiv(a, b):
    return (a + b - 1) // b


# ------------------------- tile plan / spec helpers --------------------------
_MIN_B_FOR_TC_SPLIT = 512      # force >= 2 grid steps above this (v7x 2 TCs)


def _tile_plan(b, tile_b_max):
    n_tiles = _cdiv(b, tile_b_max)
    if b >= _MIN_B_FOR_TC_SPLIT:
        n_tiles = max(n_tiles, 2)
    tile_b = _round_up(_cdiv(b, n_tiles), 8)   # f32 sublane multiple
    b_pad = n_tiles * tile_b                   # <= 7 garbage rows per tile
    return n_tiles, tile_b, b_pad


def _row_spec(tile_b, cols):
    return pl.BlockSpec((tile_b, cols), lambda i: (i, 0))


def _weight_spec(arr, single_buffer):
    # Constant block index -> fetched once, VMEM-resident across the grid.
    # Buffered(1) drops the pointless second buffer for these constant blocks.
    if single_buffer:
        return pl.BlockSpec(arr.shape, lambda i: (0, 0),
                            pipeline_mode=pl.Buffered(1))
    return pl.BlockSpec(arr.shape, lambda i: (0, 0))


_SINGLE_BUFFER_WEIGHTS_OK = True


def _launch(make_call):
    """Run make_call(single_buffer_weights); fall back to default
    double-buffered weight specs if this jax build rejects pipeline_mode."""
    global _SINGLE_BUFFER_WEIGHTS_OK
    if _SINGLE_BUFFER_WEIGHTS_OK:
        try:
            return make_call(True)
        except Exception:            # pipeline_mode unsupported on this build
            _SINGLE_BUFFER_WEIGHTS_OK = False
    return make_call(False)


def _pad_rows(x, b_pad):
    b = x.shape[0]
    return x if b == b_pad else jnp.pad(x, ((0, b_pad - b), (0, 0)))


def _as_kernel_input(x):
    # Natively-bf16 inputs stay bf16 (they get cast to bf16 for the MXU anyway;
    # this halves the only B-scaled HBM traffic). Others follow the module's
    # .float() semantics.
    if x.dtype == jnp.bfloat16:
        return x
    return x.astype(jnp.float32)


def _act_fn(activation):
    if activation == 'relu':
        return lambda x: jnp.maximum(x, 0.0)
    if activation == 'tanh':
        return jnp.tanh
    raise NotImplementedError(activation)


# ------------------------------ kernel bodies -------------------------------
def _concat_sa_bf16(s_ref, a_ref):
    # In-kernel lane concat (cheap VPU/XLU copy) -> one K tile for layer 1.
    return jnp.concatenate([s_ref[...].astype(jnp.bfloat16),
                            a_ref[...].astype(jnp.bfloat16)], axis=-1)


def _q_head(sa_bf, w1_ref, b1_ref, w2_ref, b2_ref, w3_ref, b3_ref, *,
            last_as_reduction, activation):
    act = _act_fn(activation)
    # layer 1: single MXU dot on the lane-concatenated (state, action)
    h1 = jnp.dot(sa_bf, w1_ref[...], preferred_element_type=jnp.float32)
    h1 = act(h1 + b1_ref[...])                              # f32 epilogue
    # layer 2: bf16 operands, f32 accumulation
    h2 = jnp.dot(h1.astype(jnp.bfloat16), w2_ref[...],
                 preferred_element_type=jnp.float32)
    h2 = act(h2 + b2_ref[...])                              # f32 epilogue
    # layer 3
    if last_as_reduction:
        # n_out == 1: VPU multiply + lane reduce in f32 (w3_ref is (1, F))
        return jnp.sum(h2 * w3_ref[...], axis=-1, keepdims=True) + b3_ref[...]
    return jnp.dot(h2.astype(jnp.bfloat16), w3_ref[...],
                   preferred_element_type=jnp.float32) + b3_ref[...]


def _qfunc_kernel(s_ref, a_ref, w1_ref, b1_ref, w2_ref, b2_ref, w3_ref, b3_ref,
                  out_ref, *, last_as_reduction, activation):
    sa_bf = _concat_sa_bf16(s_ref, a_ref)
    out_ref[...] = _q_head(sa_bf, w1_ref, b1_ref, w2_ref, b2_ref, w3_ref,
                           b3_ref, last_as_reduction=last_as_reduction,
                           activation=activation)


def _twin_fused_kernel(s_ref, a_ref, w1_ref, b1_ref, w2_ref, b2_ref, w3_ref,
                       b3_ref, out_ref, *, n_features, activation):
    # Both Q heads merged along the lane axis (2F <= 128): one dot per layer.
    act = _act_fn(activation)
    sa_bf = _concat_sa_bf16(s_ref, a_ref)
    h1 = act(jnp.dot(sa_bf, w1_ref[...],
                     preferred_element_type=jnp.float32) + b1_ref[...])
    h2 = act(jnp.dot(h1.astype(jnp.bfloat16), w2_ref[...],     # block-diag W2
                     preferred_element_type=jnp.float32) + b2_ref[...])
    weighted = h2 * w3_ref[...]                                 # (tb, 2F) f32
    q1 = jnp.sum(weighted[:, :n_features], axis=-1, keepdims=True)
    q2 = jnp.sum(weighted[:, n_features:], axis=-1, keepdims=True)
    out_ref[...] = jnp.concatenate([q1, q2], axis=-1) + b3_ref[...]


def _twin_kernel(s_ref, a_ref,
                 w1a, b1a, w2a, b2a, w3a, b3a,
                 w1b, b1b, w2b, b2b, w3b, b3b,
                 out_ref, *, last_as_reduction, activation):
    # General twin path (2F > 128 or n_out > 1): shared input tiles, single
    # lane-merged output (one writeback DMA per grid step).
    sa_bf = _concat_sa_bf16(s_ref, a_ref)
    q1 = _q_head(sa_bf, w1a, b1a, w2a, b2a, w3a, b3a,
                 last_as_reduction=last_as_reduction, activation=activation)
    q2 = _q_head(sa_bf, w1b, b1b, w2b, b2b, w3b, b3b,
                 last_as_reduction=last_as_reduction, activation=activation)
    out_ref[...] = jnp.concatenate([q1, q2], axis=-1)


# ------------------------------ param prep ----------------------------------
def _prep_params(params, last_as_reduction):
    """Cast matmul weights to bf16; biases / the reduction row stay f32."""
    w1, b1, w2, b2, w3, b3 = params
    n_feat = w3.shape[0]
    if last_as_reduction:
        w3k = w3.reshape(1, n_feat).astype(jnp.float32)     # (1, F) row
    else:
        w3k = w3.astype(jnp.bfloat16)
    return (w1.astype(jnp.bfloat16), b1.astype(jnp.float32),
            w2.astype(jnp.bfloat16), b2.astype(jnp.float32),
            w3k, b3.astype(jnp.float32))


def _prep_twin_fused_params(p1, p2):
    """Merge the two Q heads along the lane (feature) axis: W1 columns are
    concatenated, W2 becomes block-diagonal, W3 rows are concatenated."""
    w1a, b1a, w2a, b2a, w3a, b3a = p1
    w1b, b1b, w2b, b2b, w3b, b3b = p2
    n_feat = w2a.shape[0]
    w1c = jnp.concatenate([w1a, w1b], axis=1).astype(jnp.bfloat16)
    b1c = jnp.concatenate([b1a, b1b], axis=1).astype(jnp.float32)
    w2c = jnp.zeros((2 * n_feat, 2 * n_feat), jnp.float32)
    w2c = w2c.at[:n_feat, :n_feat].set(w2a.astype(jnp.float32))
    w2c = w2c.at[n_feat:, n_feat:].set(w2b.astype(jnp.float32))
    w2c = w2c.astype(jnp.bfloat16)
    b2c = jnp.concatenate([b2a, b2b], axis=1).astype(jnp.float32)
    w3c = jnp.concatenate([w3a.reshape(1, n_feat), w3b.reshape(1, n_feat)],
                          axis=1).astype(jnp.float32)
    b3c = jnp.concatenate([b3a, b3b], axis=1).astype(jnp.float32)
    return (w1c, b1c, w2c, b2c, w3c, b3c)


# ------------------------------- wrappers -----------------------------------
def critic_q_forward(state, action, params, *, activation='relu',
                     tile_b_max=1024):
    """Pallas forward of CriticNetworkQfunction. state: (B, Ds), action: (B, Da)."""
    state = _as_kernel_input(state)
    action = _as_kernel_input(action)
    B, d_s = state.shape
    d_a = action.shape[1]
    n_out = params[4].shape[1]
    last_as_reduction = (n_out == 1)

    n_tiles, tile_b, b_pad = _tile_plan(B, tile_b_max)
    state = _pad_rows(state, b_pad)
    action = _pad_rows(action, b_pad)
    kparams = _prep_params(params, last_as_reduction)

    def make_call(single_buffer):
        return pl.pallas_call(
            functools.partial(_qfunc_kernel,
                              last_as_reduction=last_as_reduction,
                              activation=activation),
            out_shape=jax.ShapeDtypeStruct((b_pad, n_out), jnp.float32),
            grid=(n_tiles,),
            in_specs=[_row_spec(tile_b, d_s), _row_spec(tile_b, d_a)]
                     + [_weight_spec(p, single_buffer) for p in kparams],
            out_specs=_row_spec(tile_b, n_out),
            compiler_params=pltpu.CompilerParams(
                dimension_semantics=("parallel",)),
        )(state, action, *kparams)

    q = _launch(make_call)
    return jnp.squeeze(q[:B])            # torch.squeeze semantics


def critic_twin_q_forward(state, action, params_q1, params_q2, *,
                          activation='relu', tile_b_max=1024):
    """Fused SAC twin-critic forward: one pallas_call, shared state/action DMA,
    single lane-merged (B, 2*n_out) output split in the wrapper."""
    state = _as_kernel_input(state)
    action = _as_kernel_input(action)
    B, d_s = state.shape
    d_a = action.shape[1]
    n_out = params_q1[4].shape[1]
    assert params_q2[4].shape[1] == n_out
    n_feat = params_q1[2].shape[0]
    last_as_reduction = (n_out == 1)
    fuse_heads = last_as_reduction and (2 * n_feat <= 128)

    n_tiles, tile_b, b_pad = _tile_plan(B, tile_b_max)
    state = _pad_rows(state, b_pad)
    action = _pad_rows(action, b_pad)

    if fuse_heads:
        kparams = _prep_twin_fused_params(params_q1, params_q2)
        kernel = functools.partial(_twin_fused_kernel, n_features=n_feat,
                                   activation=activation)
    else:
        kparams = (_prep_params(params_q1, last_as_reduction)
                   + _prep_params(params_q2, last_as_reduction))
        kernel = functools.partial(_twin_kernel,
                                   last_as_reduction=last_as_reduction,
                                   activation=activation)

    def make_call(single_buffer):
        return pl.pallas_call(
            kernel,
            out_shape=jax.ShapeDtypeStruct((b_pad, 2 * n_out), jnp.float32),
            grid=(n_tiles,),
            in_specs=[_row_spec(tile_b, d_s), _row_spec(tile_b, d_a)]
                     + [_weight_spec(p, single_buffer) for p in kparams],
            out_specs=_row_spec(tile_b, 2 * n_out),
            compiler_params=pltpu.CompilerParams(
                dimension_semantics=("parallel",)),
        )(state, action, *kparams)

    q12 = _launch(make_call)
    q1 = jnp.squeeze(q12[:B, :n_out])
    q2 = jnp.squeeze(q12[:B, n_out:])
    return q1, q2


# -------------------------- deterministic params ----------------------------
def xavier_uniform(key, fan_in, fan_out, gain):
    bound = gain * math.sqrt(6.0 / (fan_in + fan_out))
    return jax.random.uniform(key, (fan_in, fan_out), jnp.float32,
                              minval=-bound, maxval=bound)   # (in, out)


def linear_bias(key, fan_in, fan_out):
    bound = 1.0 / math.sqrt(fan_in)
    return jax.random.uniform(key, (1, fan_out), jnp.float32,
                              minval=-bound, maxval=bound)


def init_params(key, n_input, n_features, n_output, activation='relu'):
    gain_act = math.sqrt(2.0) if activation == 'relu' else 5.0 / 3.0
    ks = jax.random.split(key, 6)
    w1 = xavier_uniform(ks[0], n_input, n_features, gain_act)
    b1 = linear_bias(ks[1], n_input, n_features)
    w2 = xavier_uniform(ks[2], n_features, n_features, gain_act)
    b2 = linear_bias(ks[3], n_features, n_features)
    w3 = xavier_uniform(ks[4], n_features, n_output, 1.0)
    b3 = linear_bias(ks[5], n_features, n_output)
    return (w1, b1, w2, b2, w3, b3)


# ------------------------------ reference -----------------------------------
def critic_q_reference(state, action, params, *, activation='relu'):
    """Pure-JAX reference emulating the kernel's precision policy
    (bf16 matmul operands, f32 accumulation, f32 final layer).
    NOTE: differs from a pure-f32 torch forward at ~bf16-mantissa level."""
    w1, b1, w2, b2, w3, b3 = params
    act = jnp.tanh if activation == 'tanh' else jax.nn.relu
    sa = jnp.concatenate(
        [state.astype(jnp.float32), action.astype(jnp.float32)], axis=1)

    def mm(x, w):
        return jax.lax.dot(x.astype(jnp.bfloat16), w.astype(jnp.bfloat16),
                           preferred_element_type=jnp.float32)

    h1 = act(mm(sa, w1) + b1)
    h2 = act(mm(h1, w2) + b2)
    q = jnp.dot(h2, w3, preferred_element_type=jnp.float32) + b3
    return jnp.squeeze(q)


if __name__ == "__main__":
    key = jax.random.PRNGKey(0)
    k_state, k_action, k_p1, k_p2, k_s2, k_a2 = jax.random.split(key, 6)

    # small shapes implied by the module: n_input = state_dim + action_dim
    batch, state_dim, action_dim = 10, 6, 2   # batch not multiple of 8 -> pad path
    n_features, n_output = 32, 1

    state = jax.random.normal(k_state, (batch, state_dim), jnp.float32)
    action = jax.random.normal(k_action, (batch, action_dim), jnp.float32)
    params1 = init_params(k_p1, state_dim + action_dim, n_features, n_output)
    params2 = init_params(k_p2, state_dim + action_dim, n_features, n_output)

    # single critic (module semantics)
    q = jax.block_until_ready(critic_q_forward(state, action, params1))
    q_ref = critic_q_reference(state, action, params1)
    assert q.shape == (batch,), q.shape
    assert jnp.allclose(q, q_ref, atol=1e-4, rtol=1e-4), (q, q_ref)

    # fused twin critics, lane-merged heads (2F = 64 <= 128), one launch
    q1, q2 = jax.block_until_ready(
        critic_twin_q_forward(state, action, params1, params2))
    assert jnp.allclose(q1, critic_q_reference(state, action, params1),
                        atol=1e-4, rtol=1e-4)
    assert jnp.allclose(q2, critic_q_reference(state, action, params2),
                        atol=1e-4, rtol=1e-4)

    # larger batch -> >= 2 grid steps ("parallel" batch axis; v7x 2-TC path)
    batch2 = 600
    state2 = jax.random.normal(k_s2, (batch2, state_dim), jnp.float32)
    action2 = jax.random.normal(k_a2, (batch2, action_dim), jnp.float32)
    q_big = jax.block_until_ready(critic_q_forward(state2, action2, params1))
    assert q_big.shape == (batch2,)
    assert jnp.allclose(q_big, critic_q_reference(state2, action2, params1),
                        atol=1e-4, rtol=1e-4)

    # non-lane-fused twin path (2F > 128) for coverage
    n_feat_big = 80
    params1b = init_params(k_p1, state_dim + action_dim, n_feat_big, n_output)
    params2b = init_params(k_p2, state_dim + action_dim, n_feat_big, n_output)
    q1b, q2b = jax.block_until_ready(
        critic_twin_q_forward(state, action, params1b, params2b))
    assert jnp.allclose(q1b, critic_q_reference(state, action, params1b),
                        atol=1e-4, rtol=1e-4)
    assert jnp.allclose(q2b, critic_q_reference(state, action, params2b),
                        atol=1e-4, rtol=1e-4)

    print("KERNEL_OK")
</pallas_src>

<mosaic_0001>
module attributes {stable_mosaic.version = 11 : i64} {
  func.func @_qfunc_kernel(%arg0: i32, %arg1: memref<16x6xf32, #tpu.memory_space<vmem>>, %arg2: memref<16x2xf32, #tpu.memory_space<vmem>>, %arg3: memref<8x32xbf16, #tpu.memory_space<vmem>>, %arg4: memref<1x32xf32, #tpu.memory_space<vmem>>, %arg5: memref<32x32xbf16, #tpu.memory_space<vmem>>, %arg6: memref<1x32xf32, #tpu.memory_space<vmem>>, %arg7: memref<1x32xf32, #tpu.memory_space<vmem>>, %arg8: memref<1x1xf32, #tpu.memory_space<vmem>>, %arg9: memref<16x1xf32, #tpu.memory_space<vmem>>) attributes {dimension_semantics = [#tpu.dimension_semantics<parallel>], iteration_bounds = array<i64: 1>, scalar_prefetch = 0 : i64, scratch_operands = 0 : i64, tpu.core_type = #tpu.core_type<tc>, window_params = [{transform_indices = @transform_0, window_bounds = array<i64: 16, 6>}, {transform_indices = @transform_1, window_bounds = array<i64: 16, 2>}, {pipeline_mode = #tpu.pipeline_mode<synchronous>, transform_indices = @transform_2, window_bounds = array<i64: 8, 32>}, {pipeline_mode = #tpu.pipeline_mode<synchronous>, transform_indices = @transform_3, window_bounds = array<i64: 1, 32>}, {pipeline_mode = #tpu.pipeline_mode<synchronous>, transform_indices = @transform_4, window_bounds = array<i64: 32, 32>}, {pipeline_mode = #tpu.pipeline_mode<synchronous>, transform_indices = @transform_5, window_bounds = array<i64: 1, 32>}, {pipeline_mode = #tpu.pipeline_mode<synchronous>, transform_indices = @transform_6, window_bounds = array<i64: 1, 32>}, {pipeline_mode = #tpu.pipeline_mode<synchronous>, transform_indices = @transform_7, window_bounds = array<i64: 1, 1>}, {transform_indices = @transform_8, window_bounds = array<i64: 16, 1>}]} {
    %c0 = arith.constant 0 : index
    %c0_0 = arith.constant 0 : index
    %0 = vector.load %arg1[%c0, %c0_0] : memref<16x6xf32, #tpu.memory_space<vmem>>, vector<16x6xf32>
    %1 = arith.truncf %0 : vector<16x6xf32> to vector<16x6xbf16>
    %c0_1 = arith.constant 0 : index
    %c0_2 = arith.constant 0 : index
    %2 = vector.load %arg2[%c0_1, %c0_2] : memref<16x2xf32, #tpu.memory_space<vmem>>, vector<16x2xf32>
    %3 = arith.truncf %2 : vector<16x2xf32> to vector<16x2xbf16>
    %4 = tpu.concatenate %1, %3 in 1 : vector<16x6xbf16>, vector<16x2xbf16> -> vector<16x8xbf16>
    %c0_3 = arith.constant 0 : index
    %c0_4 = arith.constant 0 : index
    %5 = vector.load %arg3[%c0_3, %c0_4] : memref<8x32xbf16, #tpu.memory_space<vmem>>, vector<8x32xbf16>
    %cst = arith.constant dense<0.000000e+00> : vector<16x32xf32>
    %6 = tpu.matmul %4, %5, %cst {dimension_numbers = #tpu.dot_dimension_numbers<[1], [0], [0], [1], [0, 0, 1, 1], [], []>} : vector<16x8xbf16>, vector<8x32xbf16>, vector<16x32xf32> -> vector<16x32xf32>
    %c0_5 = arith.constant 0 : index
    %c0_6 = arith.constant 0 : index
    %7 = vector.load %arg4[%c0_5, %c0_6] : memref<1x32xf32, #tpu.memory_space<vmem>>, vector<1x32xf32>
    %8 = vector.broadcast %7 : vector<1x32xf32> to vector<16x32xf32>
    %9 = arith.addf %6, %8 : vector<16x32xf32>
    %cst_7 = arith.constant 0.000000e+00 : f32
    %10 = vector.broadcast %cst_7 : f32 to vector<16x32xf32>
    %11 = arith.maximumf %9, %10 : vector<16x32xf32>
    %12 = arith.truncf %11 : vector<16x32xf32> to vector<16x32xbf16>
    %c0_8 = arith.constant 0 : index
    %c0_9 = arith.constant 0 : index
    %13 = vector.load %arg5[%c0_8, %c0_9] : memref<32x32xbf16, #tpu.memory_space<vmem>>, vector<32x32xbf16>
    %cst_10 = arith.constant dense<0.000000e+00> : vector<16x32xf32>
    %14 = tpu.matmul %12, %13, %cst_10 {dimension_numbers = #tpu.dot_dimension_numbers<[1], [0], [0], [1], [0, 0, 1, 1], [], []>} : vector<16x32xbf16>, vector<32x32xbf16>, vector<16x32xf32> -> vector<16x32xf32>
    %c0_11 = arith.constant 0 : index
    %c0_12 = arith.constant 0 : index
    %15 = vector.load %arg6[%c0_11, %c0_12] : memref<1x32xf32, #tpu.memory_space<vmem>>, vector<1x32xf32>
    %16 = vector.broadcast %15 : vector<1x32xf32> to vector<16x32xf32>
    %17 = arith.addf %14, %16 : vector<16x32xf32>
    %cst_13 = arith.constant 0.000000e+00 : f32
    %18 = vector.broadcast %cst_13 : f32 to vector<16x32xf32>
    %19 = arith.maximumf %17, %18 : vector<16x32xf32>
    %c0_14 = arith.constant 0 : index
    %c0_15 = arith.constant 0 : index
    %20 = vector.load %arg7[%c0_14, %c0_15] : memref<1x32xf32, #tpu.memory_space<vmem>>, vector<1x32xf32>
    %21 = vector.broadcast %20 : vector<1x32xf32> to vector<16x32xf32>
    %22 = arith.mulf %19, %21 : vector<16x32xf32>
    %cst_16 = arith.constant dense<0.000000e+00> : vector<16xf32>
    %23 = vector.multi_reduction <add>, %22, %cst_16 [1] : vector<16x32xf32> to vector<16xf32>
    %24 = vector.shape_cast %23 : vector<16xf32> to vector<16x1xf32>
    %c0_17 = arith.constant 0 : index
    %c0_18 = arith.constant 0 : index
    %25 = vector.load %arg8[%c0_17, %c0_18] : memref<1x1xf32, #tpu.memory_space<vmem>>, vector<1x1xf32>
    %26 = vector.broadcast %25 : vector<1x1xf32> to vector<16x1xf32>
    %27 = arith.addf %24, %26 : vector<16x1xf32>
    %c0_19 = arith.constant 0 : index
    %c0_20 = arith.constant 0 : index
    %28 = vector.load %arg9[%c0_19, %c0_20] : memref<16x1xf32, #tpu.memory_space<vmem>>, vector<16x1xf32>
    tpu.vector_store %arg9[%c0_19, %c0_20], %27 {strides = array<i32>} : memref<16x1xf32, #tpu.memory_space<vmem>>, vector<16x1xf32>,
    return
  }
  func.func @transform_0(%arg0: i32) -> (i32, i32) {
    %c0_i32 = arith.constant 0 : i32
    %c0_i32_0 = arith.constant 0 : i32
    return %arg0, %c0_i32 : i32, i32
  }
  func.func @transform_1(%arg0: i32) -> (i32, i32) {
    %c0_i32 = arith.constant 0 : i32
    %c0_i32_0 = arith.constant 0 : i32
    return %arg0, %c0_i32 : i32, i32
  }
  func.func @transform_2(%arg0: i32) -> (i32, i32) {
    %c0_i32 = arith.constant 0 : i32
    %c0_i32_0 = arith.constant 0 : i32
    %c0_i32_1 = arith.constant 0 : i32
    return %c0_i32, %c0_i32_0 : i32, i32
  }
  func.func @transform_3(%arg0: i32) -> (i32, i32) {
    %c0_i32 = arith.constant 0 : i32
    %c0_i32_0 = arith.constant 0 : i32
    %c0_i32_1 = arith.constant 0 : i32
    return %c0_i32, %c0_i32_0 : i32, i32
  }
  func.func @transform_4(%arg0: i32) -> (i32, i32) {
    %c0_i32 = arith.constant 0 : i32
    %c0_i32_0 = arith.constant 0 : i32
    %c0_i32_1 = arith.constant 0 : i32
    return %c0_i32, %c0_i32_0 : i32, i32
  }
  func.func @transform_5(%arg0: i32) -> (i32, i32) {
    %c0_i32 = arith.constant 0 : i32
    %c0_i32_0 = arith.constant 0 : i32
    %c0_i32_1 = arith.constant 0 : i32
    return %c0_i32, %c0_i32_0 : i32, i32
  }
  func.func @transform_6(%arg0: i32) -> (i32, i32) {
    %c0_i32 = arith.constant 0 : i32
    %c0_i32_0 = arith.constant 0 : i32
    %c0_i32_1 = arith.constant 0 : i32
    return %c0_i32, %c0_i32_0 : i32, i32
  }
  func.func @transform_7(%arg0: i32) -> (i32, i32) {
    %c0_i32 = arith.constant 0 : i32
    %c0_i32_0 = arith.constant 0 : i32
    %c0_i32_1 = arith.constant 0 : i32
    return %c0_i32, %c0_i32_0 : i32, i32
  }
  func.func @transform_8(%arg0: i32) -> (i32, i32) {
    %c0_i32 = arith.constant 0 : i32
    %c0_i32_0 = arith.constant 0 : i32
    return %arg0, %c0_i32 : i32, i32
  }
}

module attributes {stable_mosaic.version = 11 : i64} {
  func.func @_qfunc_kernel(%arg0: i32, %arg1: memref<16x6xf32, #tpu.memory_space<vmem>>, %arg2: memref<16x2xf32, #tpu.memory_space<vmem>>, %arg3: memref<8x32xbf16, #tpu.memory_space<vmem>>, %arg4: memref<1x32xf32, #tpu.memory_space<vmem>>, %arg5: memref<32x32xbf16, #tpu.memory_space<vmem>>, %arg6: memref<1x32xf32, #tpu.memory_space<vmem>>, %arg7: memref<1x32xf32, #tpu.memory_space<vmem>>, %arg8: memref<1x1xf32, #tpu.memory_space<vmem>>, %arg9: memref<16x1xf32, #tpu.memory_space<vmem>>) attributes {dimension_semantics = [#tpu.dimension_semantics<parallel>], iteration_bounds = array<i64: 1>, scalar_prefetch = 0 : i64, scratch_operands = 0 : i64, tpu.core_type = #tpu.core_type<tc>, window_params = [{transform_indices = @transform_0, window_bounds = array<i64: 16, 6>}, {transform_indices = @transform_1, window_bounds = array<i64: 16, 2>}, {pipeline_mode = #tpu.pipeline_mode<synchronous>, transform_indices = @transform_2, window_bounds = array<i64: 8, 32>}, {pipeline_mode = #tpu.pipeline_mode<synchronous>, transform_indices = @transform_3, window_bounds = array<i64: 1, 32>}, {pipeline_mode = #tpu.pipeline_mode<synchronous>, transform_indices = @transform_4, window_bounds = array<i64: 32, 32>}, {pipeline_mode = #tpu.pipeline_mode<synchronous>, transform_indices = @transform_5, window_bounds = array<i64: 1, 32>}, {pipeline_mode = #tpu.pipeline_mode<synchronous>, transform_indices = @transform_6, window_bounds = array<i64: 1, 32>}, {pipeline_mode = #tpu.pipeline_mode<synchronous>, transform_indices = @transform_7, window_bounds = array<i64: 1, 1>}, {transform_indices = @transform_8, window_bounds = array<i64: 16, 1>}]} {
    %c0 = arith.constant 0 : index
    %c0_0 = arith.constant 0 : index
    %0 = vector.load %arg1[%c0, %c0_0] : memref<16x6xf32, #tpu.memory_space<vmem>>, vector<16x6xf32>
    %1 = arith.truncf %0 : vector<16x6xf32> to vector<16x6xbf16>
    %c0_1 = arith.constant 0 : index
    %c0_2 = arith.constant 0 : index
    %2 = vector.load %arg2[%c0_1, %c0_2] : memref<16x2xf32, #tpu.memory_space<vmem>>, vector<16x2xf32>
    %3 = arith.truncf %2 : vector<16x2xf32> to vector<16x2xbf16>
    %4 = tpu.concatenate %1, %3 in 1 : vector<16x6xbf16>, vector<16x2xbf16> -> vector<16x8xbf16>
    %c0_3 = arith.constant 0 : index
    %c0_4 = arith.constant 0 : index
    %5 = vector.load %arg3[%c0_3, %c0_4] : memref<8x32xbf16, #tpu.memory_space<vmem>>, vector<8x32xbf16>
    %cst = arith.constant dense<0.000000e+00> : vector<16x32xf32>
    %6 = tpu.matmul %4, %5, %cst {dimension_numbers = #tpu.dot_dimension_numbers<[1], [0], [0], [1], [0, 0, 1, 1], [], []>} : vector<16x8xbf16>, vector<8x32xbf16>, vector<16x32xf32> -> vector<16x32xf32>
    %c0_5 = arith.constant 0 : index
    %c0_6 = arith.constant 0 : index
    %7 = vector.load %arg4[%c0_5, %c0_6] : memref<1x32xf32, #tpu.memory_space<vmem>>, vector<1x32xf32>
    %8 = vector.broadcast %7 : vector<1x32xf32> to vector<16x32xf32>
    %9 = arith.addf %6, %8 : vector<16x32xf32>
    %cst_7 = arith.constant 0.000000e+00 : f32
    %10 = vector.broadcast %cst_7 : f32 to vector<16x32xf32>
    %11 = arith.maximumf %9, %10 : vector<16x32xf32>
    %12 = arith.truncf %11 : vector<16x32xf32> to vector<16x32xbf16>
    %c0_8 = arith.constant 0 : index
    %c0_9 = arith.constant 0 : index
    %13 = vector.load %arg5[%c0_8, %c0_9] : memref<32x32xbf16, #tpu.memory_space<vmem>>, vector<32x32xbf16>
    %cst_10 = arith.constant dense<0.000000e+00> : vector<16x32xf32>
    %14 = tpu.matmul %12, %13, %cst_10 {dimension_numbers = #tpu.dot_dimension_numbers<[1], [0], [0], [1], [0, 0, 1, 1], [], []>} : vector<16x32xbf16>, vector<32x32xbf16>, vector<16x32xf32> -> vector<16x32xf32>
    %c0_11 = arith.constant 0 : index
    %c0_12 = arith.constant 0 : index
    %15 = vector.load %arg6[%c0_11, %c0_12] : memref<1x32xf32, #tpu.memory_space<vmem>>, vector<1x32xf32>
    %16 = vector.broadcast %15 : vector<1x32xf32> to vector<16x32xf32>
    %17 = arith.addf %14, %16 : vector<16x32xf32>
    %cst_13 = arith.constant 0.000000e+00 : f32
    %18 = vector.broadcast %cst_13 : f32 to vector<16x32xf32>
    %19 = arith.maximumf %17, %18 : vector<16x32xf32>
    %c0_14 = arith.constant 0 : index
    %c0_15 = arith.constant 0 : index
    %20 = vector.load %arg7[%c0_14, %c0_15] : memref<1x32xf32, #tpu.memory_space<vmem>>, vector<1x32xf32>
    %21 = vector.broadcast %20 : vector<1x32xf32> to vector<16x32xf32>
    %22 = arith.mulf %19, %21 : vector<16x32xf32>
    %cst_16 = arith.constant dense<0.000000e+00> : vector<16xf32>
    %23 = vector.multi_reduction <add>, %22, %cst_16 [1] : vector<16x32xf32> to vector<16xf32>
    %24 = vector.shape_cast %23 : vector<16xf32> to vector<16x1xf32>
    %c0_17 = arith.constant 0 : index
    %c0_18 = arith.constant 0 : index
    %25 = vector.load %arg8[%c0_17, %c0_18] : memref<1x1xf32, #tpu.memory_space<vmem>>, vector<1x1xf32>
    %26 = vector.broadcast %25 : vector<1x1xf32> to vector<16x1xf32>
    %27 = arith.addf %24, %26 : vector<16x1xf32>
    %c0_19 = arith.constant 0 : index
    %c0_20 = arith.constant 0 : index
    %28 = vector.load %arg9[%c0_19, %c0_20] : memref<16x1xf32, #tpu.memory_space<vmem>>, vector<16x1xf32>
    tpu.vector_store %arg9[%c0_19, %c0_20], %27 {strides = array<i32>} : memref<16x1xf32, #tpu.memory_space<vmem>>, vector<16x1xf32>,
    return
  }
  func.func @transform_0(%arg0: i32) -> (i32, i32) {
    %c0_i32 = arith.constant 0 : i32
    %c0_i32_0 = arith.constant 0 : i32
    return %arg0, %c0_i32 : i32, i32
  }
  func.func @transform_1(%arg0: i32) -> (i32, i32) {
    %c0_i32 = arith.constant 0 : i32
    %c0_i32_0 = arith.constant 0 : i32
    return %arg0, %c0_i32 : i32, i32
  }
  func.func @transform_2(%arg0: i32) -> (i32, i32) {
    %c0_i32 = arith.constant 0 : i32
    %c0_i32_0 = arith.constant 0 : i32
    %c0_i32_1 = arith.constant 0 : i32
    return %c0_i32, %c0_i32_0 : i32, i32
  }
  func.func @transform_3(%arg0: i32) -> (i32, i32) {
    %c0_i32 = arith.constant 0 : i32
    %c0_i32_0 = arith.constant 0 : i32
    %c0_i32_1 = arith.constant 0 : i32
    return %c0_i32, %c0_i32_0 : i32, i32
  }
  func.func @transform_4(%arg0: i32) -> (i32, i32) {
    %c0_i32 = arith.constant 0 : i32
    %c0_i32_0 = arith.constant 0 : i32
    %c0_i32_1 = arith.constant 0 : i32
    return %c0_i32, %c0_i32_0 : i32, i32
  }
  func.func @transform_5(%arg0: i32) -> (i32, i32) {
    %c0_i32 = arith.constant 0 : i32
    %c0_i32_0 = arith.constant 0 : i32
    %c0_i32_1 = arith.constant 0 : i32
    return %c0_i32, %c0_i32_0 : i32, i32
  }
  func.func @transform_6(%arg0: i32) -> (i32, i32) {
    %c0_i32 = arith.constant 0 : i32
    %c0_i32_0 = arith.constant 0 : i32
    %c0_i32_1 = arith.constant 0 : i32
    return %c0_i32, %c0_i32_0 : i32, i32
  }
  func.func @transform_7(%arg0: i32) -> (i32, i32) {
    %c0_i32 = arith.constant 0 : i32
    %c0_i32_0 = arith.constant 0 : i32
    %c0_i32_1 = arith.constant 0 : i32
    return %c0_i32, %c0_i32_0 : i32, i32
  }
  func.func @transform_8(%arg0: i32) -> (i32, i32) {
    %c0_i32 = arith.constant 0 : i32
    %c0_i32_0 = arith.constant 0 : i32
    return %arg0, %c0_i32 : i32, i32
  }
}

</mosaic_0001>

<llo_original>
// kernel: tpu_custom_call.1
$region0: #{tpu_custom_call.1}
  #allocation0 [shape = 'u32[]', space=smem, size = 0x4, offset = 0x4, fixed_abs, tag = 'smem constant byte address 0x4 - core index']
  #allocation1 [shape = 'u32[144,128]{1,0:T(1,128)}', space=vmem, size = 0x12000, scoped, tag = 'internal scratch']
  #allocation2 [shape = 'f32[1,1]{1,0:T(1,128)S(1)}', space=vmem, size = 0x200, scoped, tag = 'scoped memory for tpu_custom_call.1']
  %s0 = inlined_call_operand.vmem [shape: f32[16,6], index: 0, kind: input, shape index: {}]
  %s1 = inlined_call_operand.vmem [shape: f32[16,2], index: 1, kind: input, shape index: {}]
  %s2 = inlined_call_operand.vmem [shape: bf16[8,32], index: 2, kind: input, shape index: {}]
  %s3 = inlined_call_operand.vmem [shape: f32[1,32], index: 3, kind: input, shape index: {}]
  %s4 = inlined_call_operand.vmem [shape: bf16[32,32], index: 4, kind: input, shape index: {}]
  %s5 = inlined_call_operand.vmem [shape: f32[1,32], index: 5, kind: input, shape index: {}]
  %s6 = inlined_call_operand.vmem [shape: f32[1,32], index: 6, kind: input, shape index: {}]
  %s7 = inlined_call_operand.<no memory space> [shape: f32[1,1], index: 7, kind: input, shape index: {}]
  %s8 = inlined_call_operand.vmem [shape: f32[16,1], index: 8, kind: output, shape index: {}]
  %s9 = sld [smem:[#allocation0]]
  $region42: #{tpu_custom_call.1} parent=0
    _
  %s11 = ssub.s32 1, %s9
  %s12 = scalar_select 0, %s11, %s9
  %v13 = vstv %s7
  %14 = vst [vmem:[#allocation2] sm:$0x1] %v13
  // Predicated region
  $region2: #{tpu_custom_call.1} parent=0 // pred_check
    _
  $region3: #{tpu_custom_call.1} parent=0 // pred_check_branch
    %16 = sbr.rel (0) target = $region5
  $region4: #{tpu_custom_call.1} parent=0 // pred_region
    _
  $region5: #{tpu_custom_call.1} parent=0 // pred_fallthru
    _
  // Predicated region
  $region6: #{tpu_custom_call.1} parent=0 // pred_check
    _
  $region7: #{tpu_custom_call.1} parent=0 // pred_check_branch
    %18 = sbr.rel (0) target = $region9
  $region8: #{tpu_custom_call.1} parent=0 // pred_region
    _
  $region9: #{tpu_custom_call.1} parent=0 // pred_fallthru
    _
  // Predicated region
  $region10: #{tpu_custom_call.1} parent=0 // pred_check
    _
  $region11: #{tpu_custom_call.1} parent=0 // pred_check_branch
    %20 = sbr.rel (0) target = $region13
  $region12: #{tpu_custom_call.1} parent=0 // pred_region
    _
  $region13: #{tpu_custom_call.1} parent=0 // pred_fallthru
    _
  // Predicated region
  $region14: #{tpu_custom_call.1} parent=0 // pred_check
    _
  $region15: #{tpu_custom_call.1} parent=0 // pred_check_branch
    %22 = sbr.rel (0) target = $region17
  $region16: #{tpu_custom_call.1} parent=0 // pred_region
    _
  $region17: #{tpu_custom_call.1} parent=0 // pred_fallthru
    _
  // Predicated region
  $region18: #{tpu_custom_call.1} parent=0 // pred_check
    _
  $region19: #{tpu_custom_call.1} parent=0 // pred_check_branch
    %24 = sbr.rel (0) target = $region21
  $region20: #{tpu_custom_call.1} parent=0 // pred_region
    _
  $region21: #{tpu_custom_call.1} parent=0 // pred_fallthru
    _
  // Predicated region
  $region22: #{tpu_custom_call.1} parent=0 // pred_check
    _
  $region23: #{tpu_custom_call.1} parent=0 // pred_check_branch
    %26 = sbr.rel (0) target = $region25
  $region24: #{tpu_custom_call.1} parent=0 // pred_region
    _
  $region25: #{tpu_custom_call.1} parent=0 // pred_fallthru
    _
  // Predicated region
  $region26: #{tpu_custom_call.1} parent=0 // pred_check
    _
  $region27: #{tpu_custom_call.1} parent=0 // pred_check_branch
    %28 = sbr.rel (0) target = $region29
  $region28: #{tpu_custom_call.1} parent=0 // pred_region
    _
  $region29: #{tpu_custom_call.1} parent=0 // pred_fallthru
    _
  // Predicated region
  $region30: #{tpu_custom_call.1} parent=0 // pred_check
    _
  $region31: #{tpu_custom_call.1} parent=0 // pred_check_branch
    %30 = sbr.rel (0) target = $region33
  $region32: #{tpu_custom_call.1} parent=0 // pred_region
    _
  $region33: #{tpu_custom_call.1} parent=0 // pred_fallthru
    _
  %v32 = vld [vmem:[%s0] sm:$0xff]
  %v33 = vld [vmem:[%s0 + $0x8] sm:$0xff]
  %v34 = vpack.c.bf16 %v33, %v32
  %v35 = vld [vmem:[%s1] sm:$0xff]
  %v36 = vld [vmem:[%s1 + $0x8] sm:$0xff]
  %v37 = vpack.c.bf16 %v36, %v35
  %39 = vrot.lane.b32.xlu0 %v37, 6
  %v40 = vpop.permute.xlu0 %39
  %vm41 = vcmask 48128
  %v44 = vsel %vm41, %v34, %v40
  %v45 = vld [vmem:[%s2] sm:$0xf]
  %v46 = vld [vmem:[%s3] sm:$0x1]
  %v48 = vlaneseq
  %v49 = vshrl.u32 %v48, 7
  %v50 = vsub.s32 0, %v49
  %v51 = vrot.slane %v46, %v50
  %vm53 = vcmask 64512
  %v54 = vsel %vm53, %v44, 0
  %vm56 = vcmask 1043456
  %v58 = vsel %vm56, %v45, 0
  %60 = vmatprep.subr.bf16.mxu0 0
  %61 = vmatpush1.bf16.msra.mxu0 %v58
  %62 = vmatprep.subr.bf16.mxu0 0
  %63 = vmatpush1.bf16.msra.mxu0 0
  %64 = vmatprep.subr.bf16.mxu0 0
  %65 = vmatpush1.bf16.msra.mxu0 0
  %66 = vmatprep.subr.bf16.mxu0 0
  %67 = vmatpush1.bf16.msra.mxu0 0
  %68 = vmatprep.subr.bf16.mxu0 0
  %69 = vmatpush1.bf16.msra.mxu0 0
  %70 = vmatprep.subr.bf16.mxu0 0
  %71 = vmatpush1.bf16.msra.mxu0 0
  %72 = vmatprep.subr.bf16.mxu0 0
  %73 = vmatpush1.bf16.msra.mxu0 0
  %74 = vmatprep.subr.bf16.mxu0 0
  %75 = vmatpush1.bf16.msra.mxu0 0
  %76 = vmatprep.subr.bf16.mxu0 0
  %77 = vmatpush1.bf16.msra.mxu0 0
  %78 = vmatprep.subr.bf16.mxu0 0
  %79 = vmatpush1.bf16.msra.mxu0 0
  %80 = vmatprep.subr.bf16.mxu0 0
  %81 = vmatpush1.bf16.msra.mxu0 0
  %82 = vmatprep.subr.bf16.mxu0 0
  %83 = vmatpush1.bf16.msra.mxu0 0
  %84 = vmatprep.subr.bf16.mxu0 0
  %85 = vmatpush1.bf16.msra.mxu0 0
  %86 = vmatprep.subr.bf16.mxu0 0
  %87 = vmatpush1.bf16.msra.mxu0 0
  %88 = vmatprep.subr.bf16.mxu0 0
  %89 = vmatpush1.bf16.msra.mxu0 0
  %90 = vmatprep.subr.bf16.mxu0 0
  %91 = vmatpush1.bf16.msra.mxu0 0
  %92 = vmatprep.mubr.bf16.mxu0 0
  %93 = vmatmul.mubr.bf16.gmra.mrb[0].mxu0 %v54
  %v94 = vpop.f32.mrb[0].mxu0
  %v95 = vadd.f32 %v51, %v94
  %v96 = vpop.f32.mrb[0].mxu0
  %v97 = vpop.f32.mrb[0].mxu0
  %v98 = vadd.f32 %v51, %v97
  %v99 = vpop.f32.mrb[0].mxu0
  %100 = vdwg.mxu0
  %v101 = vmax.f32 %v95, 0.0
  %v102 = vmax.f32 %v98, 0.0
  %v103 = vpack.c.bf16 %v102, %v101
  %v104 = vld [vmem:[%s4] sm:$0xf]
  %v105 = vld [vmem:[%s4 + $0x4] sm:$0xf]
  %v106 = vld [vmem:[%s4 + $0x8] sm:$0xf]
  %v107 = vld [vmem:[%s4 + $0xc] sm:$0xf]
  %v108 = vld [vmem:[%s5] sm:$0x1]
  %v110 = vlaneseq
  %v111 = vshrl.u32 %v110, 7
  %v112 = vsub.s32 0, %v111
  %v113 = vrot.slane %v108, %v112
  %v119 = vunpack.c.l.b16 %v104
  %v120 = vunpack.c.l.b16 %v105
  %v121 = vunpack.c.l.b16 %v106
  %v122 = vunpack.c.l.b16 %v107
  %v123 = vpack.c.b16 %v120, %v119
  %v124 = vpack.c.b16 %v122, %v121
  %vm127 = vcmask 261120
  %v129 = vsel %vm127, %v103, 0
  %131 = vmatprep.subr.bf16.mxu0 0
  %132 = vmatpush1.bf16.msra.mxu0 %v123
  %133 = vmatprep.subr.bf16.mxu0 0
  %134 = vmatpush1.bf16.msra.mxu0 %v124
  %135 = vmatprep.subr.bf16.mxu0 0
  %136 = vmatpush1.bf16.msra.mxu0 0
  %137 = vmatprep.subr.bf16.mxu0 0
  %138 = vmatpush1.bf16.msra.mxu0 0
  %139 = vmatprep.subr.bf16.mxu0 0
  %140 = vmatpush1.bf16.msra.mxu0 0
  %141 = vmatprep.subr.bf16.mxu0 0
  %142 = vmatpush1.bf16.msra.mxu0 0
  %143 = vmatprep.subr.bf16.mxu0 0
  %144 = vmatpush1.bf16.msra.mxu0 0
  %145 = vmatprep.subr.bf16.mxu0 0
  %146 = vmatpush1.bf16.msra.mxu0 0
  %147 = vmatprep.subr.bf16.mxu0 0
  %148 = vmatpush1.bf16.msra.mxu0 0
  %149 = vmatprep.subr.bf16.mxu0 0
  %150 = vmatpush1.bf16.msra.mxu0 0
  %151 = vmatprep.subr.bf16.mxu0 0
  %152 = vmatpush1.bf16.msra.mxu0 0
  %153 = vmatprep.subr.bf16.mxu0 0
  %154 = vmatpush1.bf16.msra.mxu0 0
  %155 = vmatprep.subr.bf16.mxu0 0
  %156 = vmatpush1.bf16.msra.mxu0 0
  %157 = vmatprep.subr.bf16.mxu0 0
  %158 = vmatpush1.bf16.msra.mxu0 0
  %159 = vmatprep.subr.bf16.mxu0 0
  %160 = vmatpush1.bf16.msra.mxu0 0
  %161 = vmatprep.subr.bf16.mxu0 0
  %162 = vmatpush1.bf16.msra.mxu0 0
  %163 = vmatprep.mubr.bf16.mxu0 0
  %164 = vmatmul.mubr.bf16.gmra.mrb[0].mxu0 %v129
  %v165 = vpop.f32.mrb[0].mxu0
  %v166 = vadd.f32 %v113, %v165
  %v167 = vpop.f32.mrb[0].mxu0
  %v168 = vpop.f32.mrb[0].mxu0
  %v169 = vadd.f32 %v113, %v168
  %v170 = vpop.f32.mrb[0].mxu0
  %171 = vdwg.mxu0
  %v172 = vmax.f32 %v166, 0.0
  %v173 = vmax.f32 %v169, 0.0
  %v174 = vld [vmem:[%s6] sm:$0x1]
  %v176 = vlaneseq
  %v177 = vshrl.u32 %v176, 7
  %v178 = vsub.s32 0, %v177
  %v179 = vrot.slane %v174, %v178
  %v181 = vmul.f32 %v172, %v179
  %v182 = vmul.f32 %v173, %v179
  %v183 = vsel %vm127, %v181, 0.0
  %184 = vadd.xlane.f32.xlu0 %v183
  %v185 = vpop.xlane.xlu0 %184
  %v186 = vsel %vm127, %v182, 0.0
  %187 = vadd.xlane.f32.xlu0 %v186
  %v188 = vpop.xlane.xlu0 %187
  %v189 = vld [vmem:[#allocation2] sm:$0x1]
  %v191 = vlaneseq
  %v192 = vshrl.u32 %v191, 7
  %v193 = vsub.s32 0, %v192
  %v194 = vrot.slane %v189, %v193
  %v196 = vadd.f32 %v185, %v194
  %v197 = vadd.f32 %v188, %v194
  %vm198 = vcmask 7168
  %199 = vst.msk [vmem:[%s8] sm:$0xff] %vm198, %v196
  %200 = vst.msk [vmem:[%s8 + $0x8] sm:$0xff] %vm198, %v197
  // Predicated region
  $region34: #{tpu_custom_call.1} parent=0 // pred_check
    _
  $region35: #{tpu_custom_call.1} parent=0 // pred_check_branch
    %202 = sbr.rel (0) target = $region37
  $region36: #{tpu_custom_call.1} parent=0 // pred_region
    _
  $region37: #{tpu_custom_call.1} parent=0 // pred_fallthru
    _
  // Predicated region
  $region38: #{tpu_custom_call.1} parent=0 // pred_check
    _
  $region39: #{tpu_custom_call.1} parent=0 // pred_check_branch
    %204 = sbr.rel (0) target = $region41
  $region40: #{tpu_custom_call.1} parent=0 // pred_region
    _
  $region41: #{tpu_custom_call.1} parent=0 // pred_fallthru
    _

// kernel: tpu_custom_call.1
$region0: #{tpu_custom_call.1}
  #allocation0 [shape = 'u32[]', space=smem, size = 0x4, offset = 0x4, fixed_abs, tag = 'smem constant byte address 0x4 - core index']
  #allocation1 [shape = 'u32[144,128]{1,0:T(1,128)}', space=vmem, size = 0x12000, scoped, tag = 'internal scratch']
  #allocation2 [shape = 'f32[1,1]{1,0:T(1,128)S(1)}', space=vmem, size = 0x200, scoped, tag = 'scoped memory for tpu_custom_call.1']
  %s0 = inlined_call_operand.vmem [shape: f32[16,6], index: 0, kind: input, shape index: {}]
  %s1 = inlined_call_operand.vmem [shape: f32[16,2], index: 1, kind: input, shape index: {}]
  %s2 = inlined_call_operand.vmem [shape: bf16[8,32], index: 2, kind: input, shape index: {}]
  %s3 = inlined_call_operand.vmem [shape: f32[1,32], index: 3, kind: input, shape index: {}]
  %s4 = inlined_call_operand.vmem [shape: bf16[32,32], index: 4, kind: input, shape index: {}]
  %s5 = inlined_call_operand.vmem [shape: f32[1,32], index: 5, kind: input, shape index: {}]
  %s6 = inlined_call_operand.vmem [shape: f32[1,32], index: 6, kind: input, shape index: {}]
  %s7 = inlined_call_operand.<no memory space> [shape: f32[1,1], index: 7, kind: input, shape index: {}]
  %s8 = inlined_call_operand.vmem [shape: f32[16,1], index: 8, kind: output, shape index: {}]
  %s9 = sld [smem:[#allocation0]]
  $region42: #{tpu_custom_call.1} parent=0
    _
  %s11 = ssub.s32 1, %s9
  %s12 = scalar_select 0, %s11, %s9
  %v13 = vstv %s7
  %14 = vst [vmem:[#allocation2] sm:$0x1] %v13
  // Predicated region
  $region2: #{tpu_custom_call.1} parent=0 // pred_check
    _
  $region3: #{tpu_custom_call.1} parent=0 // pred_check_branch
    %16 = sbr.rel (0) target = $region5
  $region4: #{tpu_custom_call.1} parent=0 // pred_region
    _
  $region5: #{tpu_custom_call.1} parent=0 // pred_fallthru
    _
  // Predicated region
  $region6: #{tpu_custom_call.1} parent=0 // pred_check
    _
  $region7: #{tpu_custom_call.1} parent=0 // pred_check_branch
    %18 = sbr.rel (0) target = $region9
  $region8: #{tpu_custom_call.1} parent=0 // pred_region
    _
  $region9: #{tpu_custom_call.1} parent=0 // pred_fallthru
    _
  // Predicated region
  $region10: #{tpu_custom_call.1} parent=0 // pred_check
    _
  $region11: #{tpu_custom_call.1} parent=0 // pred_check_branch
    %20 = sbr.rel (0) target = $region13
  $region12: #{tpu_custom_call.1} parent=0 // pred_region
    _
  $region13: #{tpu_custom_call.1} parent=0 // pred_fallthru
    _
  // Predicated region
  $region14: #{tpu_custom_call.1} parent=0 // pred_check
    _
  $region15: #{tpu_custom_call.1} parent=0 // pred_check_branch
    %22 = sbr.rel (0) target = $region17
  $region16: #{tpu_custom_call.1} parent=0 // pred_region
    _
  $region17: #{tpu_custom_call.1} parent=0 // pred_fallthru
    _
  // Predicated region
  $region18: #{tpu_custom_call.1} parent=0 // pred_check
    _
  $region19: #{tpu_custom_call.1} parent=0 // pred_check_branch
    %24 = sbr.rel (0) target = $region21
  $region20: #{tpu_custom_call.1} parent=0 // pred_region
    _
  $region21: #{tpu_custom_call.1} parent=0 // pred_fallthru
    _
  // Predicated region
  $region22: #{tpu_custom_call.1} parent=0 // pred_check
    _
  $region23: #{tpu_custom_call.1} parent=0 // pred_check_branch
    %26 = sbr.rel (0) target = $region25
  $region24: #{tpu_custom_call.1} parent=0 // pred_region
    _
  $region25: #{tpu_custom_call.1} parent=0 // pred_fallthru
    _
  // Predicated region
  $region26: #{tpu_custom_call.1} parent=0 // pred_check
    _
  $region27: #{tpu_custom_call.1} parent=0 // pred_check_branch
    %28 = sbr.rel (0) target = $region29
  $region28: #{tpu_custom_call.1} parent=0 // pred_region
    _
  $region29: #{tpu_custom_call.1} parent=0 // pred_fallthru
    _
  // Predicated region
  $region30: #{tpu_custom_call.1} parent=0 // pred_check
    _
  $region31: #{tpu_custom_call.1} parent=0 // pred_check_branch
    %30 = sbr.rel (0) target = $region33
  $region32: #{tpu_custom_call.1} parent=0 // pred_region
    _
  $region33: #{tpu_custom_call.1} parent=0 // pred_fallthru
    _
  %v32 = vld [vmem:[%s0] sm:$0xff]
  %v33 = vld [vmem:[%s0 + $0x8] sm:$0xff]
  %v34 = vpack.c.bf16 %v33, %v32
  %v35 = vld [vmem:[%s1] sm:$0xff]
  %v36 = vld [vmem:[%s1 + $0x8] sm:$0xff]
  %v37 = vpack.c.bf16 %v36, %v35
  %39 = vrot.lane.b32.xlu0 %v37, 6
  %v40 = vpop.permute.xlu0 %39
  %vm41 = vcmask 48128
  %v44 = vsel %vm41, %v34, %v40
  %v45 = vld [vmem:[%s2] sm:$0xf]
  %v46 = vld [vmem:[%s3] sm:$0x1]
  %v48 = vlaneseq
  %v49 = vshrl.u32 %v48, 7
  %v50 = vsub.s32 0, %v49
  %v51 = vrot.slane %v46, %v50
  %vm53 = vcmask 64512
  %v54 = vsel %vm53, %v44, 0
  %vm56 = vcmask 1043456
  %v58 = vsel %vm56, %v45, 0
  %60 = vmatprep.subr.bf16.mxu0 0
  %61 = vmatpush1.bf16.msra.mxu0 %v58
  %62 = vmatprep.subr.bf16.mxu0 0
  %63 = vmatpush1.bf16.msra.mxu0 0
  %64 = vmatprep.subr.bf16.mxu0 0
  %65 = vmatpush1.bf16.msra.mxu0 0
  %66 = vmatprep.subr.bf16.mxu0 0
  %67 = vmatpush1.bf16.msra.mxu0 0
  %68 = vmatprep.subr.bf16.mxu0 0
  %69 = vmatpush1.bf16.msra.mxu0 0
  %70 = vmatprep.subr.bf16.mxu0 0
  %71 = vmatpush1.bf16.msra.mxu0 0
  %72 = vmatprep.subr.bf16.mxu0 0
  %73 = vmatpush1.bf16.msra.mxu0 0
  %74 = vmatprep.subr.bf16.mxu0 0
  %75 = vmatpush1.bf16.msra.mxu0 0
  %76 = vmatprep.subr.bf16.mxu0 0
  %77 = vmatpush1.bf16.msra.mxu0 0
  %78 = vmatprep.subr.bf16.mxu0 0
  %79 = vmatpush1.bf16.msra.mxu0 0
  %80 = vmatprep.subr.bf16.mxu0 0
  %81 = vmatpush1.bf16.msra.mxu0 0
  %82 = vmatprep.subr.bf16.mxu0 0
  %83 = vmatpush1.bf16.msra.mxu0 0
  %84 = vmatprep.subr.bf16.mxu0 0
  %85 = vmatpush1.bf16.msra.mxu0 0
  %86 = vmatprep.subr.bf16.mxu0 0
  %87 = vmatpush1.bf16.msra.mxu0 0
  %88 = vmatprep.subr.bf16.mxu0 0
  %89 = vmatpush1.bf16.msra.mxu0 0
  %90 = vmatprep.subr.bf16.mxu0 0
  %91 = vmatpush1.bf16.msra.mxu0 0
  %92 = vmatprep.mubr.bf16.mxu0 0
  %93 = vmatmul.mubr.bf16.gmra.mrb[0].mxu0 %v54
  %v94 = vpop.f32.mrb[0].mxu0
  %v95 = vadd.f32 %v51, %v94
  %v96 = vpop.f32.mrb[0].mxu0
  %v97 = vpop.f32.mrb[0].mxu0
  %v98 = vadd.f32 %v51, %v97
  %v99 = vpop.f32.mrb[0].mxu0
  %100 = vdwg.mxu0
  %v101 = vmax.f32 %v95, 0.0
  %v102 = vmax.f32 %v98, 0.0
  %v103 = vpack.c.bf16 %v102, %v101
  %v104 = vld [vmem:[%s4] sm:$0xf]
  %v105 = vld [vmem:[%s4 + $0x4] sm:$0xf]
  %v106 = vld [vmem:[%s4 + $0x8] sm:$0xf]
  %v107 = vld [vmem:[%s4 + $0xc] sm:$0xf]
  %v108 = vld [vmem:[%s5] sm:$0x1]
  %v110 = vlaneseq
  %v111 = vshrl.u32 %v110, 7
  %v112 = vsub.s32 0, %v111
  %v113 = vrot.slane %v108, %v112
  %v119 = vunpack.c.l.b16 %v104
  %v120 = vunpack.c.l.b16 %v105
  %v121 = vunpack.c.l.b16 %v106
  %v122 = vunpack.c.l.b16 %v107
  %v123 = vpack.c.b16 %v120, %v119
  %v124 = vpack.c.b16 %v122, %v121
  %vm127 = vcmask 261120
  %v129 = vsel %vm127, %v103, 0
  %131 = vmatprep.subr.bf16.mxu0 0
  %132 = vmatpush1.bf16.msra.mxu0 %v123
  %133 = vmatprep.subr.bf16.mxu0 0
  %134 = vmatpush1.bf16.msra.mxu0 %v124
  %135 = vmatprep.subr.bf16.mxu0 0
  %136 = vmatpush1.bf16.msra.mxu0 0
  %137 = vmatprep.subr.bf16.mxu0 0
  %138 = vmatpush1.bf16.msra.mxu0 0
  %139 = vmatprep.subr.bf16.mxu0 0
  %140 = vmatpush1.bf16.msra.mxu0 0
  %141 = vmatprep.subr.bf16.mxu0 0
  %142 = vmatpush1.bf16.msra.mxu0 0
  %143 = vmatprep.subr.bf16.mxu0 0
  %144 = vmatpush1.bf16.msra.mxu0 0
  %145 = vmatprep.subr.bf16.mxu0 0
  %146 = vmatpush1.bf16.msra.mxu0 0
  %147 = vmatprep.subr.bf16.mxu0 0
  %148 = vmatpush1.bf16.msra.mxu0 0
  %149 = vmatprep.subr.bf16.mxu0 0
  %150 = vmatpush1.bf16.msra.mxu0 0
  %151 = vmatprep.subr.bf16.mxu0 0
  %152 = vmatpush1.bf16.msra.mxu0 0
  %153 = vmatprep.subr.bf16.mxu0 0
  %154 = vmatpush1.bf16.msra.mxu0 0
  %155 = vmatprep.subr.bf16.mxu0 0
  %156 = vmatpush1.bf16.msra.mxu0 0
  %157 = vmatprep.subr.bf16.mxu0 0
  %158 = vmatpush1.bf16.msra.mxu0 0
  %159 = vmatprep.subr.bf16.mxu0 0
  %160 = vmatpush1.bf16.msra.mxu0 0
  %161 = vmatprep.subr.bf16.mxu0 0
  %162 = vmatpush1.bf16.msra.mxu0 0
  %163 = vmatprep.mubr.bf16.mxu0 0
  %164 = vmatmul.mubr.bf16.gmra.mrb[0].mxu0 %v129
  %v165 = vpop.f32.mrb[0].mxu0
  %v166 = vadd.f32 %v113, %v165
  %v167 = vpop.f32.mrb[0].mxu0
  %v168 = vpop.f32.mrb[0].mxu0
  %v169 = vadd.f32 %v113, %v168
  %v170 = vpop.f32.mrb[0].mxu0
  %171 = vdwg.mxu0
  %v172 = vmax.f32 %v166, 0.0
  %v173 = vmax.f32 %v169, 0.0
  %v174 = vld [vmem:[%s6] sm:$0x1]
  %v176 = vlaneseq
  %v177 = vshrl.u32 %v176, 7
  %v178 = vsub.s32 0, %v177
  %v179 = vrot.slane %v174, %v178
  %v181 = vmul.f32 %v172, %v179
  %v182 = vmul.f32 %v173, %v179
  %v183 = vsel %vm127, %v181, 0.0
  %184 = vadd.xlane.f32.xlu0 %v183
  %v185 = vpop.xlane.xlu0 %184
  %v186 = vsel %vm127, %v182, 0.0
  %187 = vadd.xlane.f32.xlu0 %v186
  %v188 = vpop.xlane.xlu0 %187
  %v189 = vld [vmem:[#allocation2] sm:$0x1]
  %v191 = vlaneseq
  %v192 = vshrl.u32 %v191, 7
  %v193 = vsub.s32 0, %v192
  %v194 = vrot.slane %v189, %v193
  %v196 = vadd.f32 %v185, %v194
  %v197 = vadd.f32 %v188, %v194
  %vm198 = vcmask 7168
  %199 = vst.msk [vmem:[%s8] sm:$0xff] %vm198, %v196
  %200 = vst.msk [vmem:[%s8 + $0x8] sm:$0xff] %vm198, %v197
  // Predicated region
  $region34: #{tpu_custom_call.1} parent=0 // pred_check
    _
  $region35: #{tpu_custom_call.1} parent=0 // pred_check_branch
    %202 = sbr.rel (0) target = $region37
  $region36: #{tpu_custom_call.1} parent=0 // pred_region
    _
  $region37: #{tpu_custom_call.1} parent=0 // pred_fallthru
    _
  // Predicated region
  $region38: #{tpu_custom_call.1} parent=0 // pred_check
    _
  $region39: #{tpu_custom_call.1} parent=0 // pred_check_branch
    %204 = sbr.rel (0) target = $region41
  $region40: #{tpu_custom_call.1} parent=0 // pred_region
    _
  $region41: #{tpu_custom_call.1} parent=0 // pred_fallthru
    _

</llo_original>
